<compile_context>
chip_gen: v6e
topology: v6e:2x2x1
jax: 0.10.0
libtpu: 0.0.40
codegen_flags: <defaults>
</compile_context>

<pallas_src>
import jax
import jax.numpy as jnp
from jax.experimental import pallas as pl
from jax.experimental.pallas import tpu as pltpu


def ffn_kernel(x_ref, w1_ref, b1_ref, w2_ref, b2_ref, o_ref, acc_ref):
    # x_ref : (tm, C) f32      w1_ref: (C, th) bf16    b1_ref: (1, th) f32
    # w2_ref: (th, C) bf16     b2_ref: (1, C)  f32
    # o_ref : (tm, C) f32      acc_ref: (tm, C) f32 scratch (lives across h steps)
    h_idx = pl.program_id(1)

    @pl.when(h_idx == 0)
    def _():
        acc_ref[...] = jnp.zeros_like(acc_ref)

    x = x_ref[...].astype(jnp.bfloat16)                      # bf16 MXU operand
    h = jnp.dot(x, w1_ref[...], preferred_element_type=jnp.float32)
    h = jnp.maximum(h + b1_ref[...], 0.0)                    # bias + ReLU in f32
    acc_ref[...] += jnp.dot(h.astype(jnp.bfloat16), w2_ref[...],
                            preferred_element_type=jnp.float32)

    @pl.when(h_idx == pl.num_programs(1) - 1)
    def _():
        # TODO(synk): nn.Dropout(p=0.1) is identity in eval mode; training-mode
        # dropout would use pltpu.prng_seed + pltpu.prng_random_bits here.
        o_ref[...] = (acc_ref[...] + b2_ref[...]).astype(o_ref.dtype)


def feed_forward(x, w1, b1, w2, b2, *, tm=None, th=None):
    """x: (B, T, C) f32; w1: (C, H); b1: (H,); w2: (H, C); b2: (C,)."""
    B, T, C = x.shape
    H = w1.shape[1]
    M = B * T

    # Row tile: aim for 256 rows (fills the 256x256 MXU on v6e/v7x), but keep
    # >= 2 row-axis grid steps for small inputs so both v7x TensorCores get
    # work and the pipeline has something to overlap.
    if tm is None:
        if M >= 512:
            tm = 256
        elif M >= 16:
            tm = max(8, ((M // 2) // 8) * 8)
        else:
            tm = M
    # Hidden tile: bounds resident weight VMEM to ~2*C*th per buffer.
    if th is None:
        th = 512 if (H > 512 and H % 512 == 0) else H
    assert H % th == 0, f"hidden dim {H} must be divisible by th={th}"

    # Pad rows so the grid divides evenly (padded rows are sliced off below).
    m_pad = pl.cdiv(M, tm) * tm
    x2 = x.reshape(M, C)
    if m_pad != M:
        x2 = jnp.pad(x2, ((0, m_pad - M), (0, 0)))

    w1_bf = w1.astype(jnp.bfloat16)
    w2_bf = w2.astype(jnp.bfloat16)
    b1_2 = b1.reshape(1, H).astype(jnp.float32)
    b2_2 = b2.reshape(1, C).astype(jnp.float32)

    grid = (m_pad // tm, H // th)

    itemsize = x2.dtype.itemsize
    vmem_bytes = (
        2 * tm * C * itemsize            # x tile, double-buffered
        + 2 * tm * C * itemsize          # out tile, double-buffered
        + 2 * (C * th + th * C) * 2      # bf16 weight blocks, double-buffered
        + 2 * (th + C) * 4               # bias blocks
        + tm * C * 4                     # f32 accumulator scratch
    )
    vmem_limit = min(max(vmem_bytes + (8 << 20), 32 << 20), 100 << 20)

    cost = pl.CostEstimate(
        flops=4 * m_pad * C * H,                       # two matmuls
        transcendentals=0,
        bytes_accessed=(m_pad * C * itemsize * 2       # x + out
                        + (C * H + H * C) * 2          # bf16 weights
                        + (H + C) * 4),                # biases
    )

    out = pl.pallas_call(
        ffn_kernel,
        out_shape=jax.ShapeDtypeStruct((m_pad, C), x.dtype),
        grid_spec=pltpu.PrefetchScalarGridSpec(
            num_scalar_prefetch=0,
            grid=grid,
            in_specs=[
                pl.BlockSpec((tm, C), lambda i, h: (i, 0)),   # x row tile
                pl.BlockSpec((C, th), lambda i, h: (0, h)),   # W1 hidden slice
                pl.BlockSpec((1, th), lambda i, h: (0, h)),   # b1 hidden slice
                pl.BlockSpec((th, C), lambda i, h: (h, 0)),   # W2 hidden slice
                pl.BlockSpec((1, C), lambda i, h: (0, 0)),    # b2 (constant)
            ],
            out_specs=pl.BlockSpec((tm, C), lambda i, h: (i, 0)),
            scratch_shapes=[pltpu.VMEM((tm, C), jnp.float32)],
        ),
        compiler_params=pltpu.CompilerParams(
            dimension_semantics=("parallel", "arbitrary"),
            vmem_limit_bytes=vmem_limit,
        ),
        cost_estimate=cost,
    )(x2, w1_bf, b1_2, w2_bf, b2_2)

    return out[:M].reshape(B, T, C)


if __name__ == "__main__":
    # Shapes consistent with the module: n_embd = 256, hidden = 4 * n_embd.
    B, T, n_embd = 2, 8, 256
    hidden = 4 * n_embd

    key = jax.random.PRNGKey(0)
    kx, kw1, kb1, kw2, kb2 = jax.random.split(key, 5)

    x = jax.random.normal(kx, (B, T, n_embd), dtype=jnp.float32)

    # Deterministic init matching nn.Linear's U(-1/sqrt(fan_in), 1/sqrt(fan_in))
    lim1 = 1.0 / jnp.sqrt(jnp.float32(n_embd))
    lim2 = 1.0 / jnp.sqrt(jnp.float32(hidden))
    w1 = jax.random.uniform(kw1, (n_embd, hidden), jnp.float32, -lim1, lim1)
    b1 = jax.random.uniform(kb1, (hidden,), jnp.float32, -lim1, lim1)
    w2 = jax.random.uniform(kw2, (hidden, n_embd), jnp.float32, -lim2, lim2)
    b2 = jax.random.uniform(kb2, (n_embd,), jnp.float32, -lim2, lim2)

    out = feed_forward(x, w1, b1, w2, b2)
    out = jax.block_until_ready(out)
    assert out.shape == (B, T, n_embd)

    # Pure-JAX reference using the same bf16-operand / f32-accumulate scheme
    # the kernel uses (dropout = identity in eval mode).
    x2 = x.reshape(B * T, n_embd)
    h_ref = jnp.dot(x2.astype(jnp.bfloat16), w1.astype(jnp.bfloat16),
                    preferred_element_type=jnp.float32) + b1
    h_ref = jnp.maximum(h_ref, 0.0)
    ref = (jnp.dot(h_ref.astype(jnp.bfloat16), w2.astype(jnp.bfloat16),
                   preferred_element_type=jnp.float32) + b2).reshape(B, T, n_embd)
    max_err = float(jnp.max(jnp.abs(out - ref)))
    assert jnp.allclose(out, ref, atol=1e-3, rtol=1e-3), max_err

    print("KERNEL_OK")
</pallas_src>

<mosaic_0001>
module attributes {stable_mosaic.version = 11 : i64} {
  func.func @ffn_kernel(%arg0: i32, %arg1: i32, %arg2: memref<8x256xf32, #tpu.memory_space<vmem>>, %arg3: memref<256x512xbf16, #tpu.memory_space<vmem>>, %arg4: memref<1x512xf32, #tpu.memory_space<vmem>>, %arg5: memref<512x256xbf16, #tpu.memory_space<vmem>>, %arg6: memref<1x256xf32, #tpu.memory_space<vmem>>, %arg7: memref<8x256xf32, #tpu.memory_space<vmem>>, %arg8: memref<8x256xf32, #tpu.memory_space<vmem>>) attributes {dimension_semantics = [#tpu.dimension_semantics<parallel>, #tpu.dimension_semantics<arbitrary>], iteration_bounds = array<i64: 2, 2>, scalar_prefetch = 0 : i64, scratch_operands = 1 : i64, tpu.core_type = #tpu.core_type<tc>, window_params = [{transform_indices = @transform_0, window_bounds = array<i64: 8, 256>}, {transform_indices = @transform_1, window_bounds = array<i64: 256, 512>}, {transform_indices = @transform_2, window_bounds = array<i64: 1, 512>}, {transform_indices = @transform_3, window_bounds = array<i64: 512, 256>}, {pipeline_mode = #tpu.pipeline_mode<synchronous>, transform_indices = @transform_4, window_bounds = array<i64: 1, 256>}, {transform_indices = @transform_5, window_bounds = array<i64: 8, 256>}]} {
    %c0_i32 = arith.constant 0 : i32
    %0 = arith.cmpi eq, %arg1, %c0_i32 : i32
    %1 = arith.extui %0 : i1 to i32
    %c0_i32_0 = arith.constant 0 : i32
    %2 = arith.cmpi ne, %1, %c0_i32_0 : i32
    scf.if %2 {
      %cst_15 = arith.constant 0.000000e+00 : f32
      %21 = vector.broadcast %cst_15 : f32 to vector<8x256xf32>
      %c0_16 = arith.constant 0 : index
      %c0_17 = arith.constant 0 : index
      %22 = vector.load %arg8[%c0_16, %c0_17] : memref<8x256xf32, #tpu.memory_space<vmem>>, vector<8x256xf32>
      tpu.vector_store %arg8[%c0_16, %c0_17], %21 {strides = array<i32>} : memref<8x256xf32, #tpu.memory_space<vmem>>, vector<8x256xf32>,
    } else {
    }
    %c0 = arith.constant 0 : index
    %c0_1 = arith.constant 0 : index
    %3 = vector.load %arg2[%c0, %c0_1] : memref<8x256xf32, #tpu.memory_space<vmem>>, vector<8x256xf32>
    %4 = arith.truncf %3 : vector<8x256xf32> to vector<8x256xbf16>
    %c0_2 = arith.constant 0 : index
    %c0_3 = arith.constant 0 : index
    %5 = vector.load %arg3[%c0_2, %c0_3] : memref<256x512xbf16, #tpu.memory_space<vmem>>, vector<256x512xbf16>
    %cst = arith.constant dense<0.000000e+00> : vector<8x512xf32>
    %6 = tpu.matmul %4, %5, %cst {dimension_numbers = #tpu.dot_dimension_numbers<[1], [0], [0], [1], [0, 0, 1, 1], [], []>} : vector<8x256xbf16>, vector<256x512xbf16>, vector<8x512xf32> -> vector<8x512xf32>
    %c0_4 = arith.constant 0 : index
    %c0_5 = arith.constant 0 : index
    %7 = vector.load %arg4[%c0_4, %c0_5] : memref<1x512xf32, #tpu.memory_space<vmem>>, vector<1x512xf32>
    %8 = vector.broadcast %7 : vector<1x512xf32> to vector<8x512xf32>
    %9 = arith.addf %6, %8 : vector<8x512xf32>
    %cst_6 = arith.constant 0.000000e+00 : f32
    %10 = vector.broadcast %cst_6 : f32 to vector<8x512xf32>
    %11 = arith.maximumf %9, %10 : vector<8x512xf32>
    %c0_7 = arith.constant 0 : index
    %c0_8 = arith.constant 0 : index
    %12 = vector.load %arg8[%c0_7, %c0_8] : memref<8x256xf32, #tpu.memory_space<vmem>>, vector<8x256xf32>
    %13 = arith.truncf %11 : vector<8x512xf32> to vector<8x512xbf16>
    %c0_9 = arith.constant 0 : index
    %c0_10 = arith.constant 0 : index
    %14 = vector.load %arg5[%c0_9, %c0_10] : memref<512x256xbf16, #tpu.memory_space<vmem>>, vector<512x256xbf16>
    %cst_11 = arith.constant dense<0.000000e+00> : vector<8x256xf32>
    %15 = tpu.matmul %13, %14, %cst_11 {dimension_numbers = #tpu.dot_dimension_numbers<[1], [0], [0], [1], [0, 0, 1, 1], [], []>} : vector<8x512xbf16>, vector<512x256xbf16>, vector<8x256xf32> -> vector<8x256xf32>
    %16 = arith.addf %12, %15 : vector<8x256xf32>
    %c0_12 = arith.constant 0 : index
    %c0_13 = arith.constant 0 : index
    %17 = vector.load %arg8[%c0_12, %c0_13] : memref<8x256xf32, #tpu.memory_space<vmem>>, vector<8x256xf32>
    tpu.vector_store %arg8[%c0_12, %c0_13], %16 {strides = array<i32>} : memref<8x256xf32, #tpu.memory_space<vmem>>, vector<8x256xf32>,
    %c1_i32 = arith.constant 1 : i32
    %18 = arith.cmpi eq, %arg1, %c1_i32 : i32
    %19 = arith.extui %18 : i1 to i32
    %c0_i32_14 = arith.constant 0 : i32
    %20 = arith.cmpi ne, %19, %c0_i32_14 : i32
    scf.if %20 {
      %c0_15 = arith.constant 0 : index
      %c0_16 = arith.constant 0 : index
      %21 = vector.load %arg8[%c0_15, %c0_16] : memref<8x256xf32, #tpu.memory_space<vmem>>, vector<8x256xf32>
      %c0_17 = arith.constant 0 : index
      %c0_18 = arith.constant 0 : index
      %22 = vector.load %arg6[%c0_17, %c0_18] : memref<1x256xf32, #tpu.memory_space<vmem>>, vector<1x256xf32>
      %23 = vector.broadcast %22 : vector<1x256xf32> to vector<8x256xf32>
      %24 = arith.addf %21, %23 : vector<8x256xf32>
      %c0_19 = arith.constant 0 : index
      %c0_20 = arith.constant 0 : index
      %25 = vector.load %arg7[%c0_19, %c0_20] : memref<8x256xf32, #tpu.memory_space<vmem>>, vector<8x256xf32>
      tpu.vector_store %arg7[%c0_19, %c0_20], %24 {strides = array<i32>} : memref<8x256xf32, #tpu.memory_space<vmem>>, vector<8x256xf32>,
    } else {
    }
    return
  }
  func.func @transform_0(%arg0: i32, %arg1: i32) -> (i32, i32) {
    %c0_i32 = arith.constant 0 : i32
    %c0_i32_0 = arith.constant 0 : i32
    return %arg0, %c0_i32 : i32, i32
  }
  func.func @transform_1(%arg0: i32, %arg1: i32) -> (i32, i32) {
    %c0_i32 = arith.constant 0 : i32
    %c0_i32_0 = arith.constant 0 : i32
    return %c0_i32, %arg1 : i32, i32
  }
  func.func @transform_2(%arg0: i32, %arg1: i32) -> (i32, i32) {
    %c0_i32 = arith.constant 0 : i32
    %c0_i32_0 = arith.constant 0 : i32
    return %c0_i32, %arg1 : i32, i32
  }
  func.func @transform_3(%arg0: i32, %arg1: i32) -> (i32, i32) {
    %c0_i32 = arith.constant 0 : i32
    %c0_i32_0 = arith.constant 0 : i32
    return %arg1, %c0_i32 : i32, i32
  }
  func.func @transform_4(%arg0: i32, %arg1: i32) -> (i32, i32) {
    %c0_i32 = arith.constant 0 : i32
    %c0_i32_0 = arith.constant 0 : i32
    %c0_i32_1 = arith.constant 0 : i32
    return %c0_i32, %c0_i32_0 : i32, i32
  }
  func.func @transform_5(%arg0: i32, %arg1: i32) -> (i32, i32) {
    %c0_i32 = arith.constant 0 : i32
    %c0_i32_0 = arith.constant 0 : i32
    return %arg0, %c0_i32 : i32, i32
  }
}

</mosaic_0001>

<llo_original>
// kernel: tpu_custom_call.1
$region0: #{tpu_custom_call.1}
  #allocation0 [shape = 'u32[]', space=smem, size = 0x4, offset = 0x4, fixed_abs, tag = 'smem constant byte address 0x4 - core index']
  #allocation1 [shape = 'u32[144,128]{1,0:T(1,128)}', space=vmem, size = 0x12000, scoped, tag = 'internal scratch']
  #allocation2 [shape = 'f32[8,256]{1,0:T(8,128)}', space=vmem, size = 0x2000, scoped, tag = 'scratch operand']
  %s0 = inlined_call_operand.hbm [shape: f32[16,256], index: 0, kind: input, shape index: {}]
  %s1 = inlined_call_operand.hbm [shape: bf16[256,1024], index: 1, kind: input, shape index: {}]
  %s2 = inlined_call_operand.hbm [shape: f32[1,1024], index: 2, kind: input, shape index: {}]
  %s3 = inlined_call_operand.hbm [shape: bf16[1024,256], index: 3, kind: input, shape index: {}]
  %s4 = inlined_call_operand.vmem [shape: f32[1,256], index: 4, kind: input, shape index: {}]
  %s5 = inlined_call_operand.hbm [shape: f32[16,256], index: 5, kind: output, shape index: {}]
  %s6 = sld [smem:[#allocation0]]
  $region77: #{tpu_custom_call.1} parent=0
    _
  %s8 = ssub.s32 1, %s6
  %s9 = scalar_select 0, %s8, %s6
  $region1: #{tpu_custom_call.1} parent=0
    #allocation3 [shape = 'u8[16384]{0}', space=vmem, size = 0x4000, scoped, tag = 'input window, operand 0']
    #allocation4 [shape = 's32[2]{0}', space=sflag, size = 0x8, scoped, tag = 'scoped memory for tpu_custom_call.1']
    #allocation5 [shape = 's32[2]{0}', space=sflag, size = 0x8, scoped, tag = 'scoped memory for tpu_custom_call.1']
    #allocation6 [shape = 'u8[524288]{0}', space=vmem, size = 0x80000, scoped, tag = 'input window, operand 1']
    #allocation7 [shape = 's32[2]{0}', space=sflag, size = 0x8, scoped, tag = 'scoped memory for tpu_custom_call.1']
    #allocation8 [shape = 'u8[4096]{0}', space=vmem, size = 0x1000, scoped, tag = 'input window, operand 2']
    #allocation9 [shape = 'u8[524288]{0}', space=vmem, size = 0x80000, scoped, tag = 'input window, operand 3']
    #allocation10 [shape = 's32[2]{0}', space=sflag, size = 0x8, scoped, tag = 'scoped memory for tpu_custom_call.1']
    #allocation11 [shape = 'u8[16384]{0}', space=vmem, size = 0x4000, scoped, tag = 'output window, operand 0']
    %10 = vsyncpa [#allocation4], 0
    %s11 = scalar_lea.sflag [#allocation4], 1
    %12 = vsyncpa %s11, 0
    %13 = vsyncpa [#allocation7], 0
    %s14 = scalar_lea.sflag [#allocation7], 1
    %15 = vsyncpa %s14, 0
    %16 = vsyncpa [#allocation10], 0
    %s17 = scalar_lea.sflag [#allocation10], 1
    %18 = vsyncpa %s17, 0
    %19 = vsyncpa [#allocation5], 0
    %s20 = scalar_lea.sflag [#allocation5], 1
    %21 = vsyncpa %s20, 0
    loop: start=0, step=1, limit=6
    $region2: #{tpu_custom_call.1} parent=1 // loop_pre_header
      _
    $region3: #{tpu_custom_call.1} parent=1 // loop_header
      %s23 = sphi 0, %s27
      %p24 = scmp.ge.s32.totalorder %s23, 6
      %s30 = sphi 0, %s42
      %s31 = sphi 0, %s38
      %s32 = sphi 0, %s30
      %s33 = sphi 0, %s31
      %s34 = sphi 0, %s32
      %s35 = sphi 0, %s33
      %s45 = sphi 0, %s47
      %s48 = sphi 0, %s45
      %s49 = sphi 0, %s48
      %s65 = sphi 0, %s49
      %s71 = sphi 0, %s73
      %s74 = sphi 0, %s71
      %s75 = sphi 0, %s74
      %s91 = sphi 0, %s75
      %s97 = sphi 0, %s99
      %s100 = sphi 0, %s97
      %s101 = sphi 0, %s100
      %s117 = sphi 0, %s101
      %s123 = sphi 0, %s125
      %s126 = sphi 0, %s123
      %s127 = sphi 0, %s126
      %s143 = sphi 0, %s127
      %s147 = sphi 0, %s147
      %s149 = sphi 0, %s147
      %s150 = sphi 0, %s149
      %s164 = sphi 0, %s150
      %s170 = sphi 0, %s172
      %s173 = sphi 0, %s170
      %s174 = sphi 0, %s173
      %s190 = sphi 0, %s174
    $region4: #{tpu_custom_call.1} parent=1 // loop_header_branch
      %26 = sbr.rel (%p24) target = $region8
    $region5: #{tpu_custom_call.1} parent=1 // loop_body
      %s28 = ssub.s32 %s23, 1
      %s29 = ssub.s32 %s23, 2
      %s36 = sadd.s32 1, %s31
      %p37 = scmp.ge.s32.totalorder %s36, 2
      %s38 = scalar_select %p37, 0, %s36
      %s39 = sadd.s32 1, %s30
      %s40 = scalar_select %p37, %s39, %s30
      %p41 = scmp.ge.s32.totalorder %s40, 2
      %s42 = scalar_select %p41, 0, %s40
      %s43 = ssub.s32 %s30, %s42
      %p44 = scmp.eq.s32.totalorder %s43, 0
      %s46 = sadd.s32 %s45, 1
      %s47 = scalar_select %p44, %s45, %s46
      %p50 = pneg %p44
      %p51 = scmp.eq.s32.totalorder %s23, 3
      %p52 = por %p50, %p51
      %p53 = scmp.ne.s32.totalorder %s45, %s48
      %p54 = scmp.eq.s32.totalorder %s23, 0
      %p55 = por %p53, %p54
      %p56 = scmp.ne.s32.totalorder %s45, %s48
      %p57 = scmp.eq.s32.totalorder %s28, 3
      %p58 = por %p56, %p57
      %p59 = scmp.ne.s32.totalorder %s48, %s49
      %p60 = scmp.eq.s32.totalorder %s28, 0
      %p61 = por %p59, %p60
      %p62 = scmp.ne.s32.totalorder %s48, %s49
      %p63 = scmp.eq.s32.totalorder %s29, 3
      %p64 = por %p62, %p63
      %p66 = scmp.ne.s32.totalorder %s49, %s65
      %p67 = scmp.eq.s32.totalorder %s29, 0
      %p68 = por %p66, %p67
      %s69 = ssub.s32 %s31, %s38
      %p70 = scmp.eq.s32.totalorder %s69, 0
      %s72 = sadd.s32 %s71, 1
      %s73 = scalar_select %p70, %s71, %s72
      %p76 = pneg %p70
      %p77 = scmp.eq.s32.totalorder %s23, 3
      %p78 = por %p76, %p77
      %p79 = scmp.ne.s32.totalorder %s71, %s74
      %p80 = scmp.eq.s32.totalorder %s23, 0
      %p81 = por %p79, %p80
      %p82 = scmp.ne.s32.totalorder %s71, %s74
      %p83 = scmp.eq.s32.totalorder %s28, 3
      %p84 = por %p82, %p83
      %p85 = scmp.ne.s32.totalorder %s74, %s75
      %p86 = scmp.eq.s32.totalorder %s28, 0
      %p87 = por %p85, %p86
      %p88 = scmp.ne.s32.totalorder %s74, %s75
      %p89 = scmp.eq.s32.totalorder %s29, 3
      %p90 = por %p88, %p89
      %p92 = scmp.ne.s32.totalorder %s75, %s91
      %p93 = scmp.eq.s32.totalorder %s29, 0
      %p94 = por %p92, %p93
      %s95 = ssub.s32 %s31, %s38
      %p96 = scmp.eq.s32.totalorder %s95, 0
      %s98 = sadd.s32 %s97, 1
      %s99 = scalar_select %p96, %s97, %s98
      %p102 = pneg %p96
      %p103 = scmp.eq.s32.totalorder %s23, 3
      %p104 = por %p102, %p103
      %p105 = scmp.ne.s32.totalorder %s97, %s100
      %p106 = scmp.eq.s32.totalorder %s23, 0
      %p107 = por %p105, %p106
      %p108 = scmp.ne.s32.totalorder %s97, %s100
      %p109 = scmp.eq.s32.totalorder %s28, 3
      %p110 = por %p108, %p109
      %p111 = scmp.ne.s32.totalorder %s100, %s101
      %p112 = scmp.eq.s32.totalorder %s28, 0
      %p113 = por %p111, %p112
      %p114 = scmp.ne.s32.totalorder %s100, %s101
      %p115 = scmp.eq.s32.totalorder %s29, 3
      %p116 = por %p114, %p115
      %p118 = scmp.ne.s32.totalorder %s101, %s117
      %p119 = scmp.eq.s32.totalorder %s29, 0
      %p120 = por %p118, %p119
      %s121 = ssub.s32 %s31, %s38
      %p122 = scmp.eq.s32.totalorder %s121, 0
      %s124 = sadd.s32 %s123, 1
      %s125 = scalar_select %p122, %s123, %s124
      %p128 = pneg %p122
      %p129 = scmp.eq.s32.totalorder %s23, 3
      %p130 = por %p128, %p129
      %p131 = scmp.ne.s32.totalorder %s123, %s126
      %p132 = scmp.eq.s32.totalorder %s23, 0
      %p133 = por %p131, %p132
      %p134 = scmp.ne.s32.totalorder %s123, %s126
      %p135 = scmp.eq.s32.totalorder %s28, 3
      %p136 = por %p134, %p135
      %p137 = scmp.ne.s32.totalorder %s126, %s127
      %p138 = scmp.eq.s32.totalorder %s28, 0
      %p139 = por %p137, %p138
      %p140 = scmp.ne.s32.totalorder %s126, %s127
      %p141 = scmp.eq.s32.totalorder %s29, 3
      %p142 = por %p140, %p141
      %p144 = scmp.ne.s32.totalorder %s127, %s143
      %p145 = scmp.eq.s32.totalorder %s29, 0
      %p146 = por %p144, %p145
      %s148 = sadd.s32 %s147, 1
      %p151 = scmp.eq.s32.totalorder %s23, 3
      %p152 = scmp.ne.s32.totalorder %s147, %s149
      %p153 = scmp.eq.s32.totalorder %s23, 0
      %p154 = por %p152, %p153
      %p155 = scmp.ne.s32.totalorder %s147, %s149
      %p156 = scmp.eq.s32.totalorder %s28, 3
      %p157 = por %p155, %p156
      %p158 = scmp.ne.s32.totalorder %s149, %s150
      %p159 = scmp.eq.s32.totalorder %s28, 0
      %p160 = por %p158, %p159
      %p161 = scmp.ne.s32.totalorder %s149, %s150
      %p162 = scmp.eq.s32.totalorder %s29, 3
      %p163 = por %p161, %p162
      %p165 = scmp.ne.s32.totalorder %s150, %s164
      %p166 = scmp.eq.s32.totalorder %s29, 0
      %p167 = por %p165, %p166
      %s168 = ssub.s32 %s30, %s42
      %p169 = scmp.eq.s32.totalorder %s168, 0
      %s171 = sadd.s32 %s170, 1
      %s172 = scalar_select %p169, %s170, %s171
      %p175 = pneg %p169
      %p176 = scmp.eq.s32.totalorder %s23, 3
      %p177 = por %p175, %p176
      %p178 = scmp.ne.s32.totalorder %s170, %s173
      %p179 = scmp.eq.s32.totalorder %s23, 0
      %p180 = por %p178, %p179
      %p181 = scmp.ne.s32.totalorder %s170, %s173
      %p182 = scmp.eq.s32.totalorder %s28, 3
      %p183 = por %p181, %p182
      %p184 = scmp.ne.s32.totalorder %s173, %s174
      %p185 = scmp.eq.s32.totalorder %s28, 0
      %p186 = por %p184, %p185
      %p187 = scmp.ne.s32.totalorder %s173, %s174
      %p188 = scmp.eq.s32.totalorder %s29, 3
      %p189 = por %p187, %p188
      %p191 = scmp.ne.s32.totalorder %s174, %s190
      %p192 = scmp.eq.s32.totalorder %s29, 0
      %p193 = por %p191, %p192
      %p194 = scmp.le.s32.totalorder 1, %s23
      %p195 = scmp.lt.s32.totalorder %s23, 5
      %p196 = pnand %p194, %p195
      %p197 = pneg %p196
      // Predicated region
      $region9: #{tpu_custom_call.1} parent=5 // pred_check
        _
      $region10: #{tpu_custom_call.1} parent=5 // pred_check_branch
        %199 = sbr.rel (%p196) target = $region12
      $region11: #{tpu_custom_call.1} parent=5 // pred_region
        %s200 = ssub.s32 %s23, 1
        // Predicated region
        $region13: #{tpu_custom_call.1} parent=11 // pred_check
          %p201 = pneg %p160
        $region14: #{tpu_custom_call.1} parent=11 // pred_check_branch
          %203 = sbr.rel (%p201) target = $region16
        $region15: #{tpu_custom_call.1} parent=11 // pred_region
          _
        $region16: #{tpu_custom_call.1} parent=11 // pred_fallthru
          _
      $region12: #{tpu_custom_call.1} parent=5 // pred_fallthru
        _
      %p204 = scmp.lt.s32.totalorder %s23, 4
      // Predicated region
      $region17: #{tpu_custom_call.1} parent=5 // pred_check
        %p205 = pneg %p204
      $region18: #{tpu_custom_call.1} parent=5 // pred_check_branch
        %207 = sbr.rel (%p205) target = $region20
      $region19: #{tpu_custom_call.1} parent=5 // pred_region
        // Predicated region
        $region21: #{tpu_custom_call.1} parent=19 // pred_check
          %p208 = pneg %p55
        $region22: #{tpu_custom_call.1} parent=19 // pred_check_branch
          %210 = sbr.rel (%p208) target = $region24
        $region23: #{tpu_custom_call.1} parent=19 // pred_region
          %s211 = sand.u32 %s45, 1
          %s212 = scalar_lea.sflag [#allocation4], %s211
          %s213 = sand.u32 %s45, 1
          %s214 = smul.addr %s213, 16
          %s215 = scalar_lea.vmem [#allocation3], %s214
          %s217 = ssub.s32 256, 256
          %218 = vsyncadd %s212, %s217
          %s219 = smul.addr %s30, 2
          %s220 = smul.addr %s219, 128
          %s221 = scalar_lea.hbm %s0, %s220
          %s223 = sshll.u32 %s215, 4
          %s224 = int_to_ptr.vmem [resolvable:$true] %s223
          %226 = dma.hbm_to_vmem [thread:$0]  %s221, 256, %s224, %s212
        $region24: #{tpu_custom_call.1} parent=19 // pred_fallthru
          _
        // Predicated region
        $region25: #{tpu_custom_call.1} parent=19 // pred_check
          %p227 = pneg %p81
        $region26: #{tpu_custom_call.1} parent=19 // pred_check_branch
          %229 = sbr.rel (%p227) target = $region28
        $region27: #{tpu_custom_call.1} parent=19 // pred_region
          %s230 = sand.u32 %s23, 1
          %s231 = scalar_lea.sflag [#allocation7], %s230
          %s232 = sand.u32 %s71, 1
          %s233 = smul.addr %s232, 512
          %s234 = scalar_lea.vmem [#allocation6], %s233
          %s235 = smul.u32 4, %s31
          %s237 = ssub.s32 8192, 8192
          %238 = vsyncadd %s231, %s237
          %s239 = smul.addr %s235, 64
          %s240 = scalar_lea.hbm %s1, %s239
          %s241 = sshll.u32 %s234, 4
          %s242 = int_to_ptr.vmem [resolvable:$true] %s241
          %247 = dma.hbm_to_vmem [thread:$0]  %s240, 8192, %s242, %s231, 512, 256, 16
        $region28: #{tpu_custom_call.1} parent=19 // pred_fallthru
          _
        // Predicated region
        $region29: #{tpu_custom_call.1} parent=19 // pred_check
          %p248 = pneg %p107
        $region30: #{tpu_custom_call.1} parent=19 // pred_check_branch
          %250 = sbr.rel (%p248) target = $region32
        $region31: #{tpu_custom_call.1} parent=19 // pred_region
          %s251 = sand.u32 %s23, 1
          %s252 = scalar_lea.sflag [#allocation7], %s251
          %s253 = sand.u32 %s97, 1
          %s254 = smul.addr %s253, 4
          %s255 = scalar_lea.vmem [#allocation8], %s254
          %s256 = smul.u32 4, %s31
          %s258 = ssub.s32 64, 64
          %259 = vsyncadd %s252, %s258
          %s260 = smul.addr %s256, 16
          %s261 = scalar_lea.hbm %s2, %s260
          %s263 = sshll.u32 %s255, 4
          %s264 = int_to_ptr.vmem [resolvable:$true] %s263
          %266 = dma.hbm_to_vmem [thread:$0]  %s261, 64, %s264, %s252
        $region32: #{tpu_custom_call.1} parent=19 // pred_fallthru
          _
        // Predicated region
        $region33: #{tpu_custom_call.1} parent=19 // pred_check
          %p267 = pneg %p133
        $region34: #{tpu_custom_call.1} parent=19 // pred_check_branch
          %269 = sbr.rel (%p267) target = $region36
        $region35: #{tpu_custom_call.1} parent=19 // pred_region
          %s270 = sand.u32 %s123, 1
          %s271 = scalar_lea.sflag [#allocation10], %s270
          %s272 = sand.u32 %s123, 1
          %s273 = smul.addr %s272, 512
          %s274 = scalar_lea.vmem [#allocation9], %s273
          %s275 = smul.u32 64, %s31
          %s277 = ssub.s32 8192, 8192
          %278 = vsyncadd %s271, %s277
          %s279 = smul.addr %s275, 2
          %s280 = smul.addr %s279, 64
          %s281 = scalar_lea.hbm %s3, %s280
          %s282 = sshll.u32 %s274, 4
          %s283 = int_to_ptr.vmem [resolvable:$true] %s282
          %288 = dma.hbm_to_vmem [thread:$0]  %s281, 8192, %s283, %s271, 128, 128, 8
        $region36: #{tpu_custom_call.1} parent=19 // pred_fallthru
          _
      $region20: #{tpu_custom_call.1} parent=5 // pred_fallthru
        _
      %p289 = scmp.le.s32.totalorder 1, %s23
      %p290 = scmp.lt.s32.totalorder %s23, 5
      %p291 = pnand %p289, %p290
      %p292 = pneg %p291
      // Predicated region
      $region37: #{tpu_custom_call.1} parent=5 // pred_check
        _
      $region38: #{tpu_custom_call.1} parent=5 // pred_check_branch
        %294 = sbr.rel (%p291) target = $region40
      $region39: #{tpu_custom_call.1} parent=5 // pred_region
        %s295 = ssub.s32 %s23, 1
        %s296 = sand.u32 %s48, 1
        %s297 = scalar_lea.sflag [#allocation4], %s296
        %s298 = sand.u32 %s48, 1
        %s299 = smul.addr %s298, 16
        %s300 = scalar_lea.vmem [#allocation3], %s299
        // Predicated region
        $region41: #{tpu_custom_call.1} parent=39 // pred_check
          %p301 = pneg %p61
        $region42: #{tpu_custom_call.1} parent=39 // pred_check_branch
          %303 = sbr.rel (%p301) target = $region44
        $region43: #{tpu_custom_call.1} parent=39 // pred_region
          %304 = dma.done %s297, 256
        $region44: #{tpu_custom_call.1} parent=39 // pred_fallthru
          _
        %s305 = sand.u32 %s28, 1
        %s306 = scalar_lea.sflag [#allocation7], %s305
        %s307 = sand.u32 %s74, 1
        %s308 = smul.addr %s307, 512
        %s309 = scalar_lea.vmem [#allocation6], %s308
        // Predicated region
        $region45: #{tpu_custom_call.1} parent=39 // pred_check
          %p310 = pneg %p87
        $region46: #{tpu_custom_call.1} parent=39 // pred_check_branch
          %312 = sbr.rel (%p310) target = $region48
        $region47: #{tpu_custom_call.1} parent=39 // pred_region
          %313 = dma.done %s306, 8192
        $region48: #{tpu_custom_call.1} parent=39 // pred_fallthru
          _
        %s314 = sand.u32 %s28, 1
        %s315 = scalar_lea.sflag [#allocation7], %s314
        %s316 = sand.u32 %s100, 1
        %s317 = smul.addr %s316, 4
        %s318 = scalar_lea.vmem [#allocation8], %s317
        // Predicated region
        $region49: #{tpu_custom_call.1} parent=39 // pred_check
          %p319 = pneg %p113
        $region50: #{tpu_custom_call.1} parent=39 // pred_check_branch
          %321 = sbr.rel (%p319) target = $region52
        $region51: #{tpu_custom_call.1} parent=39 // pred_region
          %322 = dma.done %s315, 64
        $region52: #{tpu_custom_call.1} parent=39 // pred_fallthru
          _
        %s323 = sand.u32 %s126, 1
        %s324 = scalar_lea.sflag [#allocation10], %s323
        %s325 = sand.u32 %s126, 1
        %s326 = smul.addr %s325, 512
        %s327 = scalar_lea.vmem [#allocation9], %s326
        // Predicated region
        $region53: #{tpu_custom_call.1} parent=39 // pred_check
          %p328 = pneg %p139
        $region54: #{tpu_custom_call.1} parent=39 // pred_check_branch
          %330 = sbr.rel (%p328) target = $region56
        $region55: #{tpu_custom_call.1} parent=39 // pred_region
          %331 = dma.done %s324, 8192
        $region56: #{tpu_custom_call.1} parent=39 // pred_fallthru
          _
        %s332 = sand.u32 %s48, 1
        %s333 = scalar_lea.sflag [#allocation4], %s332
        %s334 = sand.u32 %s48, 1
        %s335 = smul.addr %s334, 16
        %s336 = scalar_lea.vmem [#allocation3], %s335
        %p337 = pneg %p61
        %p338 = pneg %p58
        %s339 = sand.u32 %s28, 1
        %s340 = scalar_lea.sflag [#allocation7], %s339
        %s341 = sand.u32 %s74, 1
        %s342 = smul.addr %s341, 512
        %s343 = scalar_lea.vmem [#allocation6], %s342
        %p344 = pneg %p87
        %p345 = pneg %p84
        %s346 = sand.u32 %s28, 1
        %s347 = scalar_lea.sflag [#allocation7], %s346
        %s348 = sand.u32 %s100, 1
        %s349 = smul.addr %s348, 4
        %s350 = scalar_lea.vmem [#allocation8], %s349
        %p351 = pneg %p113
        %p352 = pneg %p110
        %s353 = sand.u32 %s126, 1
        %s354 = scalar_lea.sflag [#allocation10], %s353
        %s355 = sand.u32 %s126, 1
        %s356 = smul.addr %s355, 512
        %s357 = scalar_lea.vmem [#allocation9], %s356
        %p358 = pneg %p139
        %p359 = pneg %p136
        %p360 = pneg %p160
        %p361 = pneg %p157
        %p362 = pneg %p186
        %p363 = pneg %p183
        %s364 = sand.u32 %s173, 1
        %s365 = scalar_lea.sflag [#allocation5], %s364
        %s366 = sand.u32 %s173, 1
        %s367 = smul.addr %s366, 16
        %s368 = scalar_lea.vmem [#allocation11], %s367
        %s369 = smul.u32 4, %s33
        %s370 = smul.u32 4, %s33
        %s371 = smul.u32 64, %s33
        %p372 = scmp.eq.s32.totalorder %s33, 0
        // Predicated region
        $region57: #{tpu_custom_call.1} parent=39 // pred_check
          %p373 = pneg %p372
        $region58: #{tpu_custom_call.1} parent=39 // pred_check_branch
          %375 = sbr.rel (%p373) target = $region60
        $region59: #{tpu_custom_call.1} parent=39 // pred_region
          %376 = vst [vmem:[#allocation2] sm:$0xff] 0.0
          %377 = vst [vmem:[#allocation2 + $0x8] sm:$0xff] 0.0
        $region60: #{tpu_custom_call.1} parent=39 // pred_fallthru
          _
        %v378 = vld [vmem:[%s300] sm:$0xff]
        %v379 = vld [vmem:[%s300 + $0x8] sm:$0xff]
        %v380 = vpack.c.bf16 %v378, %v378
        %v381 = vpack.c.bf16 %v379, %v379
        %v382 = vld [vmem:[%s309] sm:$0xff]
        %v383 = vld [vmem:[%s309 + $0x8] sm:$0xff]
        %v384 = vld [vmem:[%s309 + $0x10] sm:$0xff]
        %v385 = vld [vmem:[%s309 + $0x18] sm:$0xff]
        %v386 = vld [vmem:[%s309 + $0x20] sm:$0xff]
        %v387 = vld [vmem:[%s309 + $0x28] sm:$0xff]
        %v388 = vld [vmem:[%s309 + $0x30] sm:$0xff]
        %v389 = vld [vmem:[%s309 + $0x38] sm:$0xff]
        %v390 = vld [vmem:[%s309 + $0x40] sm:$0xff]
        %v391 = vld [vmem:[%s309 + $0x48] sm:$0xff]
        %v392 = vld [vmem:[%s309 + $0x50] sm:$0xff]
        %v393 = vld [vmem:[%s309 + $0x58] sm:$0xff]
        %v394 = vld [vmem:[%s309 + $0x60] sm:$0xff]
        %v395 = vld [vmem:[%s309 + $0x68] sm:$0xff]
        %v396 = vld [vmem:[%s309 + $0x70] sm:$0xff]
        %v397 = vld [vmem:[%s309 + $0x78] sm:$0xff]
        %v398 = vld [vmem:[%s309 + $0x80] sm:$0xff]
        %v399 = vld [vmem:[%s309 + $0x88] sm:$0xff]
        %v400 = vld [vmem:[%s309 + $0x90] sm:$0xff]
        %v401 = vld [vmem:[%s309 + $0x98] sm:$0xff]
        %v402 = vld [vmem:[%s309 + $0xa0] sm:$0xff]
        %v403 = vld [vmem:[%s309 + $0xa8] sm:$0xff]
        %v404 = vld [vmem:[%s309 + $0xb0] sm:$0xff]
        %v405 = vld [vmem:[%s309 + $0xb8] sm:$0xff]
        %v406 = vld [vmem:[%s309 + $0xc0] sm:$0xff]
        %v407 = vld [vmem:[%s309 + $0xc8] sm:$0xff]
        %v408 = vld [vmem:[%s309 + $0xd0] sm:$0xff]
        %v409 = vld [vmem:[%s309 + $0xd8] sm:$0xff]
        %v410 = vld [vmem:[%s309 + $0xe0] sm:$0xff]
        %v411 = vld [vmem:[%s309 + $0xe8] sm:$0xff]
        %v412 = vld [vmem:[%s309 + $0xf0] sm:$0xff]
        %v413 = vld [vmem:[%s309 + $0xf8] sm:$0xff]
        %v414 = vld [vmem:[%s309 + $0x100] sm:$0xff]
        %v415 = vld [vmem:[%s309 + $0x108] sm:$0xff]
        %v416 = vld [vmem:[%s309 + $0x110] sm:$0xff]
        %v417 = vld [vmem:[%s309 + $0x118] sm:$0xff]
        %v418 = vld [vmem:[%s309 + $0x120] sm:$0xff]
        %v419 = vld [vmem:[%s309 + $0x128] sm:$0xff]
        %v420 = vld [vmem:[%s309 + $0x130] sm:$0xff]
        %v421 = vld [vmem:[%s309 + $0x138] sm:$0xff]
        %v422 = vld [vmem:[%s309 + $0x140] sm:$0xff]
        %v423 = vld [vmem:[%s309 + $0x148] sm:$0xff]
        %v424 = vld [vmem:[%s309 + $0x150] sm:$0xff]
        %v425 = vld [vmem:[%s309 + $0x158] sm:$0xff]
        %v426 = vld [vmem:[%s309 + $0x160] sm:$0xff]
        %v427 = vld [vmem:[%s309 + $0x168] sm:$0xff]
        %v428 = vld [vmem:[%s309 + $0x170] sm:$0xff]
        %v429 = vld [vmem:[%s309 + $0x178] sm:$0xff]
        %v430 = vld [vmem:[%s309 + $0x180] sm:$0xff]
        %v431 = vld [vmem:[%s309 + $0x188] sm:$0xff]
        %v432 = vld [vmem:[%s309 + $0x190] sm:$0xff]
        %v433 = vld [vmem:[%s309 + $0x198] sm:$0xff]
        %v434 = vld [vmem:[%s309 + $0x1a0] sm:$0xff]
        %v435 = vld [vmem:[%s309 + $0x1a8] sm:$0xff]
        %v436 = vld [vmem:[%s309 + $0x1b0] sm:$0xff]
        %v437 = vld [vmem:[%s309 + $0x1b8] sm:$0xff]
        %v438 = vld [vmem:[%s309 + $0x1c0] sm:$0xff]
        %v439 = vld [vmem:[%s309 + $0x1c8] sm:$0xff]
        %v440 = vld [vmem:[%s309 + $0x1d0] sm:$0xff]
        %v441 = vld [vmem:[%s309 + $0x1d8] sm:$0xff]
        %v442 = vld [vmem:[%s309 + $0x1e0] sm:$0xff]
        %v443 = vld [vmem:[%s309 + $0x1e8] sm:$0xff]
        %v444 = vld [vmem:[%s309 + $0x1f0] sm:$0xff]
        %v445 = vld [vmem:[%s309 + $0x1f8] sm:$0xff]
        %v446 = vld [vmem:[%s318] sm:$0xf]
        %v448 = vlaneseq
        %v449 = vshrl.u32 %v448, 7
        %v450 = vsub.s32 0, %v449
        %v451 = vrot.slane %v446, %v450
        %v452 = vlaneseq
        %v453 = vshrl.u32 %v452, 7
        %v454 = vsub.s32 1, %v453
        %v455 = vrot.slane %v446, %v454
        %v456 = vlaneseq
        %v457 = vshrl.u32 %v456, 7
        %v458 = vsub.s32 2, %v457
        %v459 = vrot.slane %v446, %v458
        %v460 = vlaneseq
        %v461 = vshrl.u32 %v460, 7
        %v462 = vsub.s32 3, %v461
        %v463 = vrot.slane %v446, %v462
        %v532 = vunpack.c.l.b16 %v382
        %v533 = vunpack.c.h.b16 %v382
        %v534 = vunpack.c.l.b16 %v383
        %v535 = vunpack.c.h.b16 %v383
        %v536 = vunpack.c.l.b16 %v384
        %v537 = vunpack.c.h.b16 %v384
        %v538 = vunpack.c.l.b16 %v385
        %v539 = vunpack.c.h.b16 %v385
        %v540 = vunpack.c.l.b16 %v386
        %v541 = vunpack.c.h.b16 %v386
        %v542 = vunpack.c.l.b16 %v387
        %v543 = vunpack.c.h.b16 %v387
        %v544 = vunpack.c.l.b16 %v388
        %v545 = vunpack.c.h.b16 %v388
        %v546 = vunpack.c.l.b16 %v389
        %v547 = vunpack.c.h.b16 %v389
        %v548 = vunpack.c.l.b16 %v390
        %v549 = vunpack.c.h.b16 %v390
        %v550 = vunpack.c.l.b16 %v391
        %v551 = vunpack.c.h.b16 %v391
        %v552 = vunpack.c.l.b16 %v392
        %v553 = vunpack.c.h.b16 %v392
        %v554 = vunpack.c.l.b16 %v393
        %v555 = vunpack.c.h.b16 %v393
        %v556 = vunpack.c.l.b16 %v394
        %v557 = vunpack.c.h.b16 %v394
        %v558 = vunpack.c.l.b16 %v395
        %v559 = vunpack.c.h.b16 %v395
        %v560 = vunpack.c.l.b16 %v396
        %v561 = vunpack.c.h.b16 %v396
        %v562 = vunpack.c.l.b16 %v397
        %v563 = vunpack.c.h.b16 %v397
        %v564 = vunpack.c.l.b16 %v398
        %v565 = vunpack.c.h.b16 %v398
        %v566 = vunpack.c.l.b16 %v399
        %v567 = vunpack.c.h.b16 %v399
        %v568 = vunpack.c.l.b16 %v400
        %v569 = vunpack.c.h.b16 %v400
        %v570 = vunpack.c.l.b16 %v401
        %v571 = vunpack.c.h.b16 %v401
        %v572 = vunpack.c.l.b16 %v402
        %v573 = vunpack.c.h.b16 %v402
        %v574 = vunpack.c.l.b16 %v403
        %v575 = vunpack.c.h.b16 %v403
        %v576 = vunpack.c.l.b16 %v404
        %v577 = vunpack.c.h.b16 %v404
        %v578 = vunpack.c.l.b16 %v405
        %v579 = vunpack.c.h.b16 %v405
        %v580 = vunpack.c.l.b16 %v406
        %v581 = vunpack.c.h.b16 %v406
        %v582 = vunpack.c.l.b16 %v407
        %v583 = vunpack.c.h.b16 %v407
        %v584 = vunpack.c.l.b16 %v408
        %v585 = vunpack.c.h.b16 %v408
        %v586 = vunpack.c.l.b16 %v409
        %v587 = vunpack.c.h.b16 %v409
        %v588 = vunpack.c.l.b16 %v410
        %v589 = vunpack.c.h.b16 %v410
        %v590 = vunpack.c.l.b16 %v411
        %v591 = vunpack.c.h.b16 %v411
        %v592 = vunpack.c.l.b16 %v412
        %v593 = vunpack.c.h.b16 %v412
        %v594 = vunpack.c.l.b16 %v413
        %v595 = vunpack.c.h.b16 %v413
        %v596 = vunpack.c.l.b16 %v414
        %v597 = vunpack.c.h.b16 %v414
        %v598 = vunpack.c.l.b16 %v415
        %v599 = vunpack.c.h.b16 %v415
        %v600 = vunpack.c.l.b16 %v416
        %v601 = vunpack.c.h.b16 %v416
        %v602 = vunpack.c.l.b16 %v417
        %v603 = vunpack.c.h.b16 %v417
        %v604 = vunpack.c.l.b16 %v418
        %v605 = vunpack.c.h.b16 %v418
        %v606 = vunpack.c.l.b16 %v419
        %v607 = vunpack.c.h.b16 %v419
        %v608 = vunpack.c.l.b16 %v420
        %v609 = vunpack.c.h.b16 %v420
        %v610 = vunpack.c.l.b16 %v421
        %v611 = vunpack.c.h.b16 %v421
        %v612 = vunpack.c.l.b16 %v422
        %v613 = vunpack.c.h.b16 %v422
        %v614 = vunpack.c.l.b16 %v423
        %v615 = vunpack.c.h.b16 %v423
        %v616 = vunpack.c.l.b16 %v424
        %v617 = vunpack.c.h.b16 %v424
        %v618 = vunpack.c.l.b16 %v425
        %v619 = vunpack.c.h.b16 %v425
        %v620 = vunpack.c.l.b16 %v426
        %v621 = vunpack.c.h.b16 %v426
        %v622 = vunpack.c.l.b16 %v427
        %v623 = vunpack.c.h.b16 %v427
        %v624 = vunpack.c.l.b16 %v428
        %v625 = vunpack.c.h.b16 %v428
        %v626 = vunpack.c.l.b16 %v429
        %v627 = vunpack.c.h.b16 %v429
        %v628 = vunpack.c.l.b16 %v430
        %v629 = vunpack.c.h.b16 %v430
        %v630 = vunpack.c.l.b16 %v431
        %v631 = vunpack.c.h.b16 %v431
        %v632 = vunpack.c.l.b16 %v432
        %v633 = vunpack.c.h.b16 %v432
        %v634 = vunpack.c.l.b16 %v433
        %v635 = vunpack.c.h.b16 %v433
        %v636 = vunpack.c.l.b16 %v434
        %v637 = vunpack.c.h.b16 %v434
        %v638 = vunpack.c.l.b16 %v435
        %v639 = vunpack.c.h.b16 %v435
        %v640 = vunpack.c.l.b16 %v436
        %v641 = vunpack.c.h.b16 %v436
        %v642 = vunpack.c.l.b16 %v437
        %v643 = vunpack.c.h.b16 %v437
        %v644 = vunpack.c.l.b16 %v438
        %v645 = vunpack.c.h.b16 %v438
        %v646 = vunpack.c.l.b16 %v439
        %v647 = vunpack.c.h.b16 %v439
        %v648 = vunpack.c.l.b16 %v440
        %v649 = vunpack.c.h.b16 %v440
        %v650 = vunpack.c.l.b16 %v441
        %v651 = vunpack.c.h.b16 %v441
        %v652 = vunpack.c.l.b16 %v442
        %v653 = vunpack.c.h.b16 %v442
        %v654 = vunpack.c.l.b16 %v443
        %v655 = vunpack.c.h.b16 %v443
        %v656 = vunpack.c.l.b16 %v444
        %v657 = vunpack.c.h.b16 %v444
        %v658 = vunpack.c.l.b16 %v445
        %v659 = vunpack.c.h.b16 %v445
        %v660 = vpack.c.b16 %v536, %v532
        %v661 = vpack.c.b16 %v537, %v533
        %v662 = vpack.c.b16 %v538, %v534
        %v663 = vpack.c.b16 %v539, %v535
        %v664 = vpack.c.b16 %v544, %v540
        %v665 = vpack.c.b16 %v545, %v541
        %v666 = vpack.c.b16 %v546, %v542
        %v667 = vpack.c.b16 %v547, %v543
        %v668 = vpack.c.b16 %v552, %v548
        %v669 = vpack.c.b16 %v553, %v549
        %v670 = vpack.c.b16 %v554, %v550
        %v671 = vpack.c.b16 %v555, %v551
        %v672 = vpack.c.b16 %v560, %v556
        %v673 = vpack.c.b16 %v561, %v557
        %v674 = vpack.c.b16 %v562, %v558
        %v675 = vpack.c.b16 %v563, %v559
        %v676 = vpack.c.b16 %v568, %v564
        %v677 = vpack.c.b16 %v569, %v565
        %v678 = vpack.c.b16 %v570, %v566
        %v679 = vpack.c.b16 %v571, %v567
        %v680 = vpack.c.b16 %v576, %v572
        %v681 = vpack.c.b16 %v577, %v573
        %v682 = vpack.c.b16 %v578, %v574
        %v683 = vpack.c.b16 %v579, %v575
        %v684 = vpack.c.b16 %v584, %v580
        %v685 = vpack.c.b16 %v585, %v581
        %v686 = vpack.c.b16 %v586, %v582
        %v687 = vpack.c.b16 %v587, %v583
        %v688 = vpack.c.b16 %v592, %v588
        %v689 = vpack.c.b16 %v593, %v589
        %v690 = vpack.c.b16 %v594, %v590
        %v691 = vpack.c.b16 %v595, %v591
        %v692 = vpack.c.b16 %v600, %v596
        %v693 = vpack.c.b16 %v601, %v597
        %v694 = vpack.c.b16 %v602, %v598
        %v695 = vpack.c.b16 %v603, %v599
        %v696 = vpack.c.b16 %v608, %v604
        %v697 = vpack.c.b16 %v609, %v605
        %v698 = vpack.c.b16 %v610, %v606
        %v699 = vpack.c.b16 %v611, %v607
        %v700 = vpack.c.b16 %v616, %v612
        %v701 = vpack.c.b16 %v617, %v613
        %v702 = vpack.c.b16 %v618, %v614
        %v703 = vpack.c.b16 %v619, %v615
        %v704 = vpack.c.b16 %v624, %v620
        %v705 = vpack.c.b16 %v625, %v621
        %v706 = vpack.c.b16 %v626, %v622
        %v707 = vpack.c.b16 %v627, %v623
        %v708 = vpack.c.b16 %v632, %v628
        %v709 = vpack.c.b16 %v633, %v629
        %v710 = vpack.c.b16 %v634, %v630
        %v711 = vpack.c.b16 %v635, %v631
        %v712 = vpack.c.b16 %v640, %v636
        %v713 = vpack.c.b16 %v641, %v637
        %v714 = vpack.c.b16 %v642, %v638
        %v715 = vpack.c.b16 %v643, %v639
        %v716 = vpack.c.b16 %v648, %v644
        %v717 = vpack.c.b16 %v649, %v645
        %v718 = vpack.c.b16 %v650, %v646
        %v719 = vpack.c.b16 %v651, %v647
        %v720 = vpack.c.b16 %v656, %v652
        %v721 = vpack.c.b16 %v657, %v653
        %v722 = vpack.c.b16 %v658, %v654
        %v723 = vpack.c.b16 %v659, %v655
        %788 = vmatprep.subr.bf16.mxu0 %v689
        %789 = vmatpush1.bf16.msra.mxu0 %v688
        %790 = vmatprep.subr.bf16.mxu0 %v685
        %791 = vmatpush1.bf16.msra.mxu0 %v684
        %792 = vmatprep.subr.bf16.mxu0 %v681
        %793 = vmatpush1.bf16.msra.mxu0 %v680
        %794 = vmatprep.subr.bf16.mxu0 %v677
        %795 = vmatpush1.bf16.msra.mxu0 %v676
        %796 = vmatprep.subr.bf16.mxu0 %v673
        %797 = vmatpush1.bf16.msra.mxu0 %v672
        %798 = vmatprep.subr.bf16.mxu0 %v669
        %799 = vmatpush1.bf16.msra.mxu0 %v668
        %800 = vmatprep.subr.bf16.mxu0 %v665
        %801 = vmatpush1.bf16.msra.mxu0 %v664
        %802 = vmatprep.subr.bf16.mxu0 %v661
        %803 = vmatpush1.bf16.msra.mxu0 %v660
        %804 = vmatprep.subr.bf16.mxu0 %v721
        %805 = vmatpush2.bf16.msra.mxu0 %v720
        %806 = vmatprep.subr.bf16.mxu0 %v717
        %807 = vmatpush2.bf16.msra.mxu0 %v716
        %808 = vmatprep.subr.bf16.mxu0 %v713
        %809 = vmatpush2.bf16.msra.mxu0 %v712
        %810 = vmatprep.subr.bf16.mxu0 %v709
        %811 = vmatpush2.bf16.msra.mxu0 %v708
        %812 = vmatprep.subr.bf16.mxu0 %v705
        %813 = vmatpush2.bf16.msra.mxu0 %v704
        %814 = vmatprep.subr.bf16.mxu0 %v701
        %815 = vmatpush2.bf16.msra.mxu0 %v700
        %816 = vmatprep.subr.bf16.mxu0 %v697
        %817 = vmatpush2.bf16.msra.mxu0 %v696
        %818 = vmatprep.subr.bf16.mxu0 %v693
        %819 = vmatpush2.bf16.msra.mxu0 %v692
        %820 = vmatprep.mubr.bf16.mxu0 %v381
        %821 = vmatmul.mubr.bf16.gmra.mxu0 %v380
        %v822 = vpop.f32.mrf.mxu0
        %v823 = vadd.f32 %v451, %v822
        %v824 = vpop.f32.mrf.mxu0
        %v825 = vadd.f32 %v455, %v824
        %v826 = vpop.f32.mrf.mxu0
        %v827 = vpop.f32.mrf.mxu0
        %828 = vdwg.mxu0
        %829 = vmatprep.subr.bf16.mxu0 %v691
        %830 = vmatpush1.bf16.msra.mxu0 %v690
        %831 = vmatprep.subr.bf16.mxu0 %v687
        %832 = vmatpush1.bf16.msra.mxu0 %v686
        %833 = vmatprep.subr.bf16.mxu0 %v683
        %834 = vmatpush1.bf16.msra.mxu0 %v682
        %835 = vmatprep.subr.bf16.mxu0 %v679
        %836 = vmatpush1.bf16.msra.mxu0 %v678
        %837 = vmatprep.subr.bf16.mxu0 %v675
        %838 = vmatpush1.bf16.msra.mxu0 %v674
        %839 = vmatprep.subr.bf16.mxu0 %v671
        %840 = vmatpush1.bf16.msra.mxu0 %v670
        %841 = vmatprep.subr.bf16.mxu0 %v667
        %842 = vmatpush1.bf16.msra.mxu0 %v666
        %843 = vmatprep.subr.bf16.mxu0 %v663
        %844 = vmatpush1.bf16.msra.mxu0 %v662
        %845 = vmatprep.subr.bf16.mxu0 %v723
        %846 = vmatpush2.bf16.msra.mxu0 %v722
        %847 = vmatprep.subr.bf16.mxu0 %v719
        %848 = vmatpush2.bf16.msra.mxu0 %v718
        %849 = vmatprep.subr.bf16.mxu0 %v715
        %850 = vmatpush2.bf16.msra.mxu0 %v714
        %851 = vmatprep.subr.bf16.mxu0 %v711
        %852 = vmatpush2.bf16.msra.mxu0 %v710
        %853 = vmatprep.subr.bf16.mxu0 %v707
        %854 = vmatpush2.bf16.msra.mxu0 %v706
        %855 = vmatprep.subr.bf16.mxu0 %v703
        %856 = vmatpush2.bf16.msra.mxu0 %v702
        %857 = vmatprep.subr.bf16.mxu0 %v699
        %858 = vmatpush2.bf16.msra.mxu0 %v698
        %859 = vmatprep.subr.bf16.mxu0 %v695
        %860 = vmatpush2.bf16.msra.mxu0 %v694
        %861 = vmatprep.mubr.bf16.mxu0 %v381
        %862 = vmatmul.mubr.bf16.gmra.mxu0 %v380
        %v863 = vpop.f32.mrf.mxu0
        %v864 = vadd.f32 %v459, %v863
        %v865 = vpop.f32.mrf.mxu0
        %v866 = vadd.f32 %v463, %v865
        %v867 = vpop.f32.mrf.mxu0
        %v868 = vpop.f32.mrf.mxu0
        %869 = vdwg.mxu0
        %v870 = vmax.f32 %v823, 0.0
        %v871 = vmax.f32 %v825, 0.0
        %v872 = vmax.f32 %v864, 0.0
        %v873 = vmax.f32 %v866, 0.0
        %v874 = vld [vmem:[#allocation2] sm:$0xff]
        %v875 = vld [vmem:[#allocation2 + $0x8] sm:$0xff]
        %v876 = vpack.c.bf16 %v870, %v870
        %v877 = vpack.c.bf16 %v871, %v871
        %v878 = vpack.c.bf16 %v872, %v872
        %v879 = vpack.c.bf16 %v873, %v873
        %v880 = vld [vmem:[%s327] sm:$0xff]
        %v881 = vld [vmem:[%s327 + $0x8] sm:$0xff]
        %v882 = vld [vmem:[%s327 + $0x10] sm:$0xff]
        %v883 = vld [vmem:[%s327 + $0x18] sm:$0xff]
        %v884 = vld [vmem:[%s327 + $0x20] sm:$0xff]
        %v885 = vld [vmem:[%s327 + $0x28] sm:$0xff]
        %v886 = vld [vmem:[%s327 + $0x30] sm:$0xff]
        %v887 = vld [vmem:[%s327 + $0x38] sm:$0xff]
        %v888 = vld [vmem:[%s327 + $0x40] sm:$0xff]
        %v889 = vld [vmem:[%s327 + $0x48] sm:$0xff]
        %v890 = vld [vmem:[%s327 + $0x50] sm:$0xff]
        %v891 = vld [vmem:[%s327 + $0x58] sm:$0xff]
        %v892 = vld [vmem:[%s327 + $0x60] sm:$0xff]
        %v893 = vld [vmem:[%s327 + $0x68] sm:$0xff]
        %v894 = vld [vmem:[%s327 + $0x70] sm:$0xff]
        %v895 = vld [vmem:[%s327 + $0x78] sm:$0xff]
        %v896 = vld [vmem:[%s327 + $0x80] sm:$0xff]
        %v897 = vld [vmem:[%s327 + $0x88] sm:$0xff]
        %v898 = vld [vmem:[%s327 + $0x90] sm:$0xff]
        %v899 = vld [vmem:[%s327 + $0x98] sm:$0xff]
        %v900 = vld [vmem:[%s327 + $0xa0] sm:$0xff]
        %v901 = vld [vmem:[%s327 + $0xa8] sm:$0xff]
        %v902 = vld [vmem:[%s327 + $0xb0] sm:$0xff]
        %v903 = vld [vmem:[%s327 + $0xb8] sm:$0xff]
        %v904 = vld [vmem:[%s327 + $0xc0] sm:$0xff]
        %v905 = vld [vmem:[%s327 + $0xc8] sm:$0xff]
        %v906 = vld [vmem:[%s327 + $0xd0] sm:$0xff]
        %v907 = vld [vmem:[%s327 + $0xd8] sm:$0xff]
        %v908 = vld [vmem:[%s327 + $0xe0] sm:$0xff]
        %v909 = vld [vmem:[%s327 + $0xe8] sm:$0xff]
        %v910 = vld [vmem:[%s327 + $0xf0] sm:$0xff]
        %v911 = vld [vmem:[%s327 + $0xf8] sm:$0xff]
        %v912 = vld [vmem:[%s327 + $0x100] sm:$0xff]
        %v913 = vld [vmem:[%s327 + $0x108] sm:$0xff]
        %v914 = vld [vmem:[%s327 + $0x110] sm:$0xff]
        %v915 = vld [vmem:[%s327 + $0x118] sm:$0xff]
        %v916 = vld [vmem:[%s327 + $0x120] sm:$0xff]
        %v917 = vld [vmem:[%s327 + $0x128] sm:$0xff]
        %v918 = vld [vmem:[%s327 + $0x130] sm:$0xff]
        %v919 = vld [vmem:[%s327 + $0x138] sm:$0xff]
        %v920 = vld [vmem:[%s327 + $0x140] sm:$0xff]
        %v921 = vld [vmem:[%s327 + $0x148] sm:$0xff]
        %v922 = vld [vmem:[%s327 + $0x150] sm:$0xff]
        %v923 = vld [vmem:[%s327 + $0x158] sm:$0xff]
        %v924 = vld [vmem:[%s327 + $0x160] sm:$0xff]
        %v925 = vld [vmem:[%s327 + $0x168] sm:$0xff]
        %v926 = vld [vmem:[%s327 + $0x170] sm:$0xff]
        %v927 = vld [vmem:[%s327 + $0x178] sm:$0xff]
        %v928 = vld [vmem:[%s327 + $0x180] sm:$0xff]
        %v929 = vld [vmem:[%s327 + $0x188] sm:$0xff]
        %v930 = vld [vmem:[%s327 + $0x190] sm:$0xff]
        %v931 = vld [vmem:[%s327 + $0x198] sm:$0xff]
        %v932 = vld [vmem:[%s327 + $0x1a0] sm:$0xff]
        %v933 = vld [vmem:[%s327 + $0x1a8] sm:$0xff]
        %v934 = vld [vmem:[%s327 + $0x1b0] sm:$0xff]
        %v935 = vld [vmem:[%s327 + $0x1b8] sm:$0xff]
        %v936 = vld [vmem:[%s327 + $0x1c0] sm:$0xff]
        %v937 = vld [vmem:[%s327 + $0x1c8] sm:$0xff]
        %v938 = vld [vmem:[%s327 + $0x1d0] sm:$0xff]
        %v939 = vld [vmem:[%s327 + $0x1d8] sm:$0xff]
        %v940 = vld [vmem:[%s327 + $0x1e0] sm:$0xff]
        %v941 = vld [vmem:[%s327 + $0x1e8] sm:$0xff]
        %v942 = vld [vmem:[%s327 + $0x1f0] sm:$0xff]
        %v943 = vld [vmem:[%s327 + $0x1f8] sm:$0xff]
        %v1008 = vunpack.c.l.b16 %v880
        %v1009 = vunpack.c.h.b16 %v880
        %v1010 = vunpack.c.l.b16 %v881
        %v1011 = vunpack.c.h.b16 %v881
        %v1012 = vunpack.c.l.b16 %v882
        %v1013 = vunpack.c.h.b16 %v882
        %v1014 = vunpack.c.l.b16 %v883
        %v1015 = vunpack.c.h.b16 %v883
        %v1016 = vunpack.c.l.b16 %v884
        %v1017 = vunpack.c.h.b16 %v884
        %v1018 = vunpack.c.l.b16 %v885
        %v1019 = vunpack.c.h.b16 %v885
        %v1020 = vunpack.c.l.b16 %v886
        %v1021 = vunpack.c.h.b16 %v886
        %v1022 = vunpack.c.l.b16 %v887
        %v1023 = vunpack.c.h.b16 %v887
        %v1024 = vunpack.c.l.b16 %v888
        %v1025 = vunpack.c.h.b16 %v888
        %v1026 = vunpack.c.l.b16 %v889
        %v1027 = vunpack.c.h.b16 %v889
        %v1028 = vunpack.c.l.b16 %v890
        %v1029 = vunpack.c.h.b16 %v890
        %v1030 = vunpack.c.l.b16 %v891
        %v1031 = vunpack.c.h.b16 %v891
        %v1032 = vunpack.c.l.b16 %v892
        %v1033 = vunpack.c.h.b16 %v892
        %v1034 = vunpack.c.l.b16 %v893
        %v1035 = vunpack.c.h.b16 %v893
        %v1036 = vunpack.c.l.b16 %v894
        %v1037 = vunpack.c.h.b16 %v894
        %v1038 = vunpack.c.l.b16 %v895
        %v1039 = vunpack.c.h.b16 %v895
        %v1040 = vunpack.c.l.b16 %v896
        %v1041 = vunpack.c.h.b16 %v896
        %v1042 = vunpack.c.l.b16 %v897
        %v1043 = vunpack.c.h.b16 %v897
        %v1044 = vunpack.c.l.b16 %v898
        %v1045 = vunpack.c.h.b16 %v898
        %v1046 = vunpack.c.l.b16 %v899
        %v1047 = vunpack.c.h.b16 %v899
        %v1048 = vunpack.c.l.b16 %v900
        %v1049 = vunpack.c.h.b16 %v900
        %v1050 = vunpack.c.l.b16 %v901
        %v1051 = vunpack.c.h.b16 %v901
        %v1052 = vunpack.c.l.b16 %v902
        %v1053 = vunpack.c.h.b16 %v902
        %v1054 = vunpack.c.l.b16 %v903
        %v1055 = vunpack.c.h.b16 %v903
        %v1056 = vunpack.c.l.b16 %v904
        %v1057 = vunpack.c.h.b16 %v904
        %v1058 = vunpack.c.l.b16 %v905
        %v1059 = vunpack.c.h.b16 %v905
        %v1060 = vunpack.c.l.b16 %v906
        %v1061 = vunpack.c.h.b16 %v906
        %v1062 = vunpack.c.l.b16 %v907
        %v1063 = vunpack.c.h.b16 %v907
        %v1064 = vunpack.c.l.b16 %v908
        %v1065 = vunpack.c.h.b16 %v908
        %v1066 = vunpack.c.l.b16 %v909
        %v1067 = vunpack.c.h.b16 %v909
        %v1068 = vunpack.c.l.b16 %v910
        %v1069 = vunpack.c.h.b16 %v910
        %v1070 = vunpack.c.l.b16 %v911
        %v1071 = vunpack.c.h.b16 %v911
        %v1072 = vunpack.c.l.b16 %v912
        %v1073 = vunpack.c.h.b16 %v912
        %v1074 = vunpack.c.l.b16 %v913
        %v1075 = vunpack.c.h.b16 %v913
        %v1076 = vunpack.c.l.b16 %v914
        %v1077 = vunpack.c.h.b16 %v914
        %v1078 = vunpack.c.l.b16 %v915
        %v1079 = vunpack.c.h.b16 %v915
        %v1080 = vunpack.c.l.b16 %v916
        %v1081 = vunpack.c.h.b16 %v916
        %v1082 = vunpack.c.l.b16 %v917
        %v1083 = vunpack.c.h.b16 %v917
        %v1084 = vunpack.c.l.b16 %v918
        %v1085 = vunpack.c.h.b16 %v918
        %v1086 = vunpack.c.l.b16 %v919
        %v1087 = vunpack.c.h.b16 %v919
        %v1088 = vunpack.c.l.b16 %v920
        %v1089 = vunpack.c.h.b16 %v920
        %v1090 = vunpack.c.l.b16 %v921
        %v1091 = vunpack.c.h.b16 %v921
        %v1092 = vunpack.c.l.b16 %v922
        %v1093 = vunpack.c.h.b16 %v922
        %v1094 = vunpack.c.l.b16 %v923
        %v1095 = vunpack.c.h.b16 %v923
        %v1096 = vunpack.c.l.b16 %v924
        %v1097 = vunpack.c.h.b16 %v924
        %v1098 = vunpack.c.l.b16 %v925
        %v1099 = vunpack.c.h.b16 %v925
        %v1100 = vunpack.c.l.b16 %v926
        %v1101 = vunpack.c.h.b16 %v926
        %v1102 = vunpack.c.l.b16 %v927
        %v1103 = vunpack.c.h.b16 %v927
        %v1104 = vunpack.c.l.b16 %v928
        %v1105 = vunpack.c.h.b16 %v928
        %v1106 = vunpack.c.l.b16 %v929
        %v1107 = vunpack.c.h.b16 %v929
        %v1108 = vunpack.c.l.b16 %v930
        %v1109 = vunpack.c.h.b16 %v930
        %v1110 = vunpack.c.l.b16 %v931
        %v1111 = vunpack.c.h.b16 %v931
        %v1112 = vunpack.c.l.b16 %v932
        %v1113 = vunpack.c.h.b16 %v932
        %v1114 = vunpack.c.l.b16 %v933
        %v1115 = vunpack.c.h.b16 %v933
        %v1116 = vunpack.c.l.b16 %v934
        %v1117 = vunpack.c.h.b16 %v934
        %v1118 = vunpack.c.l.b16 %v935
        %v1119 = vunpack.c.h.b16 %v935
        %v1120 = vunpack.c.l.b16 %v936
        %v1121 = vunpack.c.h.b16 %v936
        %v1122 = vunpack.c.l.b16 %v937
        %v1123 = vunpack.c.h.b16 %v937
        %v1124 = vunpack.c.l.b16 %v938
        %v1125 = vunpack.c.h.b16 %v938
        %v1126 = vunpack.c.l.b16 %v939
        %v1127 = vunpack.c.h.b16 %v939
        %v1128 = vunpack.c.l.b16 %v940
        %v1129 = vunpack.c.h.b16 %v940
        %v1130 = vunpack.c.l.b16 %v941
        %v1131 = vunpack.c.h.b16 %v941
        %v1132 = vunpack.c.l.b16 %v942
        %v1133 = vunpack.c.h.b16 %v942
        %v1134 = vunpack.c.l.b16 %v943
        %v1135 = vunpack.c.h.b16 %v943
        %v1136 = vpack.c.b16 %v1010, %v1008
        %v1137 = vpack.c.b16 %v1011, %v1009
        %v1138 = vpack.c.b16 %v1014, %v1012
        %v1139 = vpack.c.b16 %v1015, %v1013
        %v1140 = vpack.c.b16 %v1018, %v1016
        %v1141 = vpack.c.b16 %v1019, %v1017
        %v1142 = vpack.c.b16 %v1022, %v1020
        %v1143 = vpack.c.b16 %v1023, %v1021
        %v1144 = vpack.c.b16 %v1026, %v1024
        %v1145 = vpack.c.b16 %v1027, %v1025
        %v1146 = vpack.c.b16 %v1030, %v1028
        %v1147 = vpack.c.b16 %v1031, %v1029
        %v1148 = vpack.c.b16 %v1034, %v1032
        %v1149 = vpack.c.b16 %v1035, %v1033
        %v1150 = vpack.c.b16 %v1038, %v1036
        %v1151 = vpack.c.b16 %v1039, %v1037
        %v1152 = vpack.c.b16 %v1042, %v1040
        %v1153 = vpack.c.b16 %v1043, %v1041
        %v1154 = vpack.c.b16 %v1046, %v1044
        %v1155 = vpack.c.b16 %v1047, %v1045
        %v1156 = vpack.c.b16 %v1050, %v1048
        %v1157 = vpack.c.b16 %v1051, %v1049
        %v1158 = vpack.c.b16 %v1054, %v1052
        %v1159 = vpack.c.b16 %v1055, %v1053
        %v1160 = vpack.c.b16 %v1058, %v1056
        %v1161 = vpack.c.b16 %v1059, %v1057
        %v1162 = vpack.c.b16 %v1062, %v1060
        %v1163 = vpack.c.b16 %v1063, %v1061
        %v1164 = vpack.c.b16 %v1066, %v1064
        %v1165 = vpack.c.b16 %v1067, %v1065
        %v1166 = vpack.c.b16 %v1070, %v1068
        %v1167 = vpack.c.b16 %v1071, %v1069
        %v1168 = vpack.c.b16 %v1074, %v1072
        %v1169 = vpack.c.b16 %v1075, %v1073
        %v1170 = vpack.c.b16 %v1078, %v1076
        %v1171 = vpack.c.b16 %v1079, %v1077
        %v1172 = vpack.c.b16 %v1082, %v1080
        %v1173 = vpack.c.b16 %v1083, %v1081
        %v1174 = vpack.c.b16 %v1086, %v1084
        %v1175 = vpack.c.b16 %v1087, %v1085
        %v1176 = vpack.c.b16 %v1090, %v1088
        %v1177 = vpack.c.b16 %v1091, %v1089
        %v1178 = vpack.c.b16 %v1094, %v1092
        %v1179 = vpack.c.b16 %v1095, %v1093
        %v1180 = vpack.c.b16 %v1098, %v1096
        %v1181 = vpack.c.b16 %v1099, %v1097
        %v1182 = vpack.c.b16 %v1102, %v1100
        %v1183 = vpack.c.b16 %v1103, %v1101
        %v1184 = vpack.c.b16 %v1106, %v1104
        %v1185 = vpack.c.b16 %v1107, %v1105
        %v1186 = vpack.c.b16 %v1110, %v1108
        %v1187 = vpack.c.b16 %v1111, %v1109
        %v1188 = vpack.c.b16 %v1114, %v1112
        %v1189 = vpack.c.b16 %v1115, %v1113
        %v1190 = vpack.c.b16 %v1118, %v1116
        %v1191 = vpack.c.b16 %v1119, %v1117
        %v1192 = vpack.c.b16 %v1122, %v1120
        %v1193 = vpack.c.b16 %v1123, %v1121
        %v1194 = vpack.c.b16 %v1126, %v1124
        %v1195 = vpack.c.b16 %v1127, %v1125
        %v1196 = vpack.c.b16 %v1130, %v1128
        %v1197 = vpack.c.b16 %v1131, %v1129
        %v1198 = vpack.c.b16 %v1134, %v1132
        %v1199 = vpack.c.b16 %v1135, %v1133
        %1264 = vmatprep.subr.bf16.mxu0 %v1151
        %1265 = vmatpush1.bf16.msra.mxu0 %v1150
        %1266 = vmatprep.subr.bf16.mxu0 %v1149
        %1267 = vmatpush1.bf16.msra.mxu0 %v1148
        %1268 = vmatprep.subr.bf16.mxu0 %v1147
        %1269 = vmatpush1.bf16.msra.mxu0 %v1146
        %1270 = vmatprep.subr.bf16.mxu0 %v1145
        %1271 = vmatpush1.bf16.msra.mxu0 %v1144
        %1272 = vmatprep.subr.bf16.mxu0 %v1143
        %1273 = vmatpush1.bf16.msra.mxu0 %v1142
        %1274 = vmatprep.subr.bf16.mxu0 %v1141
        %1275 = vmatpush1.bf16.msra.mxu0 %v1140
        %1276 = vmatprep.subr.bf16.mxu0 %v1139
        %1277 = vmatpush1.bf16.msra.mxu0 %v1138
        %1278 = vmatprep.subr.bf16.mxu0 %v1137
        %1279 = vmatpush1.bf16.msra.mxu0 %v1136
        %1280 = vmatprep.subr.bf16.mxu0 %v1167
        %1281 = vmatpush2.bf16.msra.mxu0 %v1166
        %1282 = vmatprep.subr.bf16.mxu0 %v1165
        %1283 = vmatpush2.bf16.msra.mxu0 %v1164
        %1284 = vmatprep.subr.bf16.mxu0 %v1163
        %1285 = vmatpush2.bf16.msra.mxu0 %v1162
        %1286 = vmatprep.subr.bf16.mxu0 %v1161
        %1287 = vmatpush2.bf16.msra.mxu0 %v1160
        %1288 = vmatprep.subr.bf16.mxu0 %v1159
        %1289 = vmatpush2.bf16.msra.mxu0 %v1158
        %1290 = vmatprep.subr.bf16.mxu0 %v1157
        %1291 = vmatpush2.bf16.msra.mxu0 %v1156
        %1292 = vmatprep.subr.bf16.mxu0 %v1155
        %1293 = vmatpush2.bf16.msra.mxu0 %v1154
        %1294 = vmatprep.subr.bf16.mxu0 %v1153
        %1295 = vmatpush2.bf16.msra.mxu0 %v1152
        %1296 = vmatprep.mubr.bf16.mxu0 %v877
        %1297 = vmatmul.mubr.bf16.gmra.mxu0 %v876
        %v1298 = vpop.f32.mrf.mxu0
        %v1299 = vadd.f32 0.0, %v1298
        %v1300 = vpop.f32.mrf.mxu0
        %v1301 = vadd.f32 0.0, %v1300
        %v1302 = vpop.f32.mrf.mxu0
        %v1303 = vpop.f32.mrf.mxu0
        %1304 = vdwg.mxu0
        %1305 = vmatprep.subr.bf16.mxu0 %v1183
        %1306 = vmatpush1.bf16.msra.mxu0 %v1182
        %1307 = vmatprep.subr.bf16.mxu0 %v1181
        %1308 = vmatpush1.bf16.msra.mxu0 %v1180
        %1309 = vmatprep.subr.bf16.mxu0 %v1179
        %1310 = vmatpush1.bf16.msra.mxu0 %v1178
        %1311 = vmatprep.subr.bf16.mxu0 %v1177
        %1312 = vmatpush1.bf16.msra.mxu0 %v1176
        %1313 = vmatprep.subr.bf16.mxu0 %v1175
        %1314 = vmatpush1.bf16.msra.mxu0 %v1174
        %1315 = vmatprep.subr.bf16.mxu0 %v1173
        %1316 = vmatpush1.bf16.msra.mxu0 %v1172
        %1317 = vmatprep.subr.bf16.mxu0 %v1171
        %1318 = vmatpush1.bf16.msra.mxu0 %v1170
        %1319 = vmatprep.subr.bf16.mxu0 %v1169
        %1320 = vmatpush1.bf16.msra.mxu0 %v1168
        %1321 = vmatprep.subr.bf16.mxu0 %v1199
        %1322 = vmatpush2.bf16.msra.mxu0 %v1198
        %1323 = vmatprep.subr.bf16.mxu0 %v1197
        %1324 = vmatpush2.bf16.msra.mxu0 %v1196
        %1325 = vmatprep.subr.bf16.mxu0 %v1195
        %1326 = vmatpush2.bf16.msra.mxu0 %v1194
        %1327 = vmatprep.subr.bf16.mxu0 %v1193
        %1328 = vmatpush2.bf16.msra.mxu0 %v1192
        %1329 = vmatprep.subr.bf16.mxu0 %v1191
        %1330 = vmatpush2.bf16.msra.mxu0 %v1190
        %1331 = vmatprep.subr.bf16.mxu0 %v1189
        %1332 = vmatpush2.bf16.msra.mxu0 %v1188
        %1333 = vmatprep.subr.bf16.mxu0 %v1187
        %1334 = vmatpush2.bf16.msra.mxu0 %v1186
        %1335 = vmatprep.subr.bf16.mxu0 %v1185
        %1336 = vmatpush2.bf16.msra.mxu0 %v1184
        %1337 = vmatprep.mubr.bf16.mxu0 %v879
        %1338 = vmatmul.mubr.bf16.gmra.mxu0 %v878
        %v1339 = vpop.f32.mrf.mxu0
        %v1340 = vadd.f32 %v1299, %v1339
        %v1341 = vpop.f32.mrf.mxu0
        %v1342 = vadd.f32 %v1301, %v1341
        %v1343 = vpop.f32.mrf.mxu0
        %v1344 = vpop.f32.mrf.mxu0
        %1345 = vdwg.mxu0
        %v1346 = vadd.f32 %v874, %v1340
        %v1347 = vadd.f32 %v875, %v1342
        %1348 = vst [vmem:[#allocation2] sm:$0xff] %v1346
        %1349 = vst [vmem:[#allocation2 + $0x8] sm:$0xff] %v1347
        %p1350 = scmp.eq.s32.totalorder %s33, 1
        // Predicated region
        $region61: #{tpu_custom_call.1} parent=39 // pred_check
          %p1351 = pneg %p1350
        $region62: #{tpu_custom_call.1} parent=39 // pred_check_branch
          %1353 = sbr.rel (%p1351) target = $region64
        $region63: #{tpu_custom_call.1} parent=39 // pred_region
          %v1354 = vld [vmem:[#allocation2] sm:$0xff]
          %v1355 = vld [vmem:[#allocation2 + $0x8] sm:$0xff]
          %v1356 = vld [vmem:[%s4] sm:$0x3]
          %v1358 = vlaneseq
          %v1359 = vshrl.u32 %v1358, 7
          %v1360 = vsub.s32 0, %v1359
          %v1361 = vrot.slane %v1356, %v1360
          %v1362 = vlaneseq
          %v1363 = vshrl.u32 %v1362, 7
          %v1364 = vsub.s32 1, %v1363
          %v1365 = vrot.slane %v1356, %v1364
          %v1368 = vadd.f32 %v1354, %v1361
          %v1369 = vadd.f32 %v1355, %v1365
          %1370 = vst [vmem:[%s368] sm:$0xff] %v1368
          %1371 = vst [vmem:[%s368 + $0x8] sm:$0xff] %v1369
        $region64: #{tpu_custom_call.1} parent=39 // pred_fallthru
          _
        %s1372 = sand.u32 %s173, 1
        %s1373 = scalar_lea.sflag [#allocation5], %s1372
        %s1374 = sand.u32 %s173, 1
        %s1375 = smul.addr %s1374, 16
        %s1376 = scalar_lea.vmem [#allocation11], %s1375
        // Predicated region
        $region65: #{tpu_custom_call.1} parent=39 // pred_check
          %p1377 = pneg %p183
        $region66: #{tpu_custom_call.1} parent=39 // pred_check_branch
          %1379 = sbr.rel (%p1377) target = $region68
        $region67: #{tpu_custom_call.1} parent=39 // pred_region
          %s1381 = ssub.s32 256, 256
          %1382 = vsyncadd %s1373, %s1381
          %s1383 = smul.addr %s32, 2
          %s1384 = smul.addr %s1383, 128
          %s1385 = scalar_lea.hbm %s5, %s1384
          %s1387 = sshll.u32 %s1376, 4
          %s1388 = int_to_ptr.vmem [resolvable:$true] %s1387
          %1390 = dma.vmem_to_hbm [thread:$0]  %s1388, 256, %s1385, %s1373
        $region68: #{tpu_custom_call.1} parent=39 // pred_fallthru
          _
      $region40: #{tpu_custom_call.1} parent=5 // pred_fallthru
        _
      %p1391 = scmp.le.s32.totalorder 2, %s23
      // Predicated region
      $region69: #{tpu_custom_call.1} parent=5 // pred_check
        %p1392 = pneg %p1391
      $region70: #{tpu_custom_call.1} parent=5 // pred_check_branch
        %1394 = sbr.rel (%p1392) target = $region72
      $region71: #{tpu_custom_call.1} parent=5 // pred_region
        %s1395 = ssub.s32 %s23, 2
        // Predicated region
        $region73: #{tpu_custom_call.1} parent=71 // pred_check
          %p1396 = pneg %p189
        $region74: #{tpu_custom_call.1} parent=71 // pred_check_branch
          %1398 = sbr.rel (%p1396) target = $region76
        $region75: #{tpu_custom_call.1} parent=71 // pred_region
          %s1399 = sand.u32 %s174, 1
          %s1400 = scalar_lea.sflag [#allocation5], %s1399
          %s1401 = sand.u32 %s174, 1
          %s1402 = smul.addr %s1401, 16
          %s1403 = scalar_lea.vmem [#allocation11], %s1402
          %1404 = dma.done %s1400, 256
        $region76: #{tpu_custom_call.1} parent=71 // pred_fallthru
          _
      $region72: #{tpu_custom_call.1} parent=5 // pred_fallthru
        _
    $region6: #{tpu_custom_call.1} parent=1 // loop_footer
      %s27 = sadd.s32 1, %s23
    $region7: #{tpu_custom_call.1} parent=1 // loop_footer_branch
      %22 = sbr.rel target = $region3
    $region8: #{tpu_custom_call.1} parent=1 // loop_exit
      _
    %1405 = vsyncpa [#allocation4], 1
    %s1406 = scalar_lea.sflag [#allocation4], 1
    %1407 = vsyncpa %s1406, 1
    %1408 = vsyncpa [#allocation7], 1
    %s1409 = scalar_lea.sflag [#allocation7], 1
    %1410 = vsyncpa %s1409, 1
    %1411 = vsyncpa [#allocation10], 1
    %s1412 = scalar_lea.sflag [#allocation10], 1
    %1413 = vsyncpa %s1412, 1
    %1414 = vsyncpa [#allocation5], 1
    %s1415 = scalar_lea.sflag [#allocation5], 1
    %1416 = vsyncpa %s1415, 1

</llo_original>
